<compile_context>
chip_gen: v6e
topology: v6e:2x2x1
jax: 0.10.0
libtpu: 0.0.40
codegen_flags: <defaults>
</compile_context>

<pallas_src>
import functools

import jax
import jax.numpy as jnp
from jax import lax
from jax.experimental import pallas as pl
from jax.experimental.pallas import tpu as pltpu

_LANE = 128
_SUBLANE = 8


def _round_up(x, m):
    return (x + m - 1) // m * m


def _choose_hw_tile(hw, row_cap):
    """Tile-row count <= row_cap (multiple of 8).  Prefers an exact divisor of
    hw (no padding); otherwise returns row_cap and the caller pads hw up to a
    multiple of it (tail rows masked in the stats pass).  Never exceeds the
    VMEM-derived row_cap, so a bad HW value can't blow past v7x's 64 MiB."""
    row_cap = max(_SUBLANE, (int(row_cap) // _SUBLANE) * _SUBLANE)
    hw8 = _round_up(hw, _SUBLANE)
    if hw8 <= row_cap:
        return hw8
    t = row_cap
    while t >= max(row_cap // 2, _SUBLANE):
        if hw % t == 0:
            return t
        t -= _SUBLANE
    return row_cap


# -----------------------------------------------------------------------------
# Kernel 1: 1x1 Conv + GroupNorm(32)   (self.input_proj[idx]) — two passes
# -----------------------------------------------------------------------------
def _gn_stats_kernel(x_ref, w_ref, b_ref, stats_ref, *, hw, thw, n_per_split,
                     need_mask):
    # x_ref: (1, thw, Cin) bf16 — one HW tile of one batch element.
    y = (jnp.dot(x_ref[0], w_ref[...], preferred_element_type=jnp.float32)
         + b_ref[...])                                          # (thw, D) f32
    if need_mask:  # zero the contributions of the padded HW tail
        row0 = (pl.program_id(0) * n_per_split + pl.program_id(2)) * thw
        ridx = row0 + lax.broadcasted_iota(jnp.int32, y.shape, 0)
        y = jnp.where(ridx < hw, y, 0.0)
    upd = jnp.concatenate([jnp.sum(y, axis=0, keepdims=True),
                           jnp.sum(y * y, axis=0, keepdims=True)], axis=0)

    @pl.when(pl.program_id(2) == 0)
    def _():
        stats_ref[...] = jnp.zeros_like(stats_ref)

    stats_ref[...] += upd.reshape(stats_ref.shape)


def _gn_apply_kernel(x_ref, w_ref, scale_ref, shift_ref, o_ref):
    # Per-(batch, channel) scale/shift precomputed outside; this loop is pure
    # streaming: matmul + fused multiply-add + cast.
    y = jnp.dot(x_ref[0], w_ref[...], preferred_element_type=jnp.float32)
    o_ref[0] = (y * scale_ref[0] + shift_ref[0]).astype(o_ref.dtype)


def input_proj_groupnorm(x_nhwc, w, b, gamma, beta, *, num_groups=32, eps=1e-5,
                         out_dtype=jnp.bfloat16, max_tile_rows=8192,
                         vmem_budget_bytes=20 << 20):
    """1x1 conv (channel matmul) + GroupNorm.  x_nhwc: (B, H, W, Cin) f32."""
    B, H, W, Cin = x_nhwc.shape
    D = w.shape[1]
    assert D % num_groups == 0
    gsz = D // num_groups
    HW = H * W

    # bf16 activations / weights (halves HBM traffic), f32 accumulation.
    x = x_nhwc.reshape(B, HW, Cin).astype(jnp.bfloat16)
    wq = w.astype(jnp.bfloat16)
    b2 = b.reshape(1, D).astype(jnp.float32)

    out_bytes = jnp.dtype(out_dtype).itemsize
    # Per HW row: dbl-buffered bf16 input, dbl-buffered output, f32 intermediate.
    per_row = 2 * Cin * 2 + 2 * D * out_bytes + D * 4 + 16
    row_cap = min(int(max_tile_rows),
                  max(_SUBLANE, vmem_budget_bytes // max(per_row, 1)))
    thw = _choose_hw_tile(HW, row_cap)
    HW_pad = _round_up(HW, thw)
    n_hw = HW_pad // thw
    need_mask = HW_pad != HW
    if need_mask:
        x = jnp.pad(x, ((0, 0), (0, HW_pad - HW), (0, 0)))

    # Split the pass-1 HW reduction in two so both v7x TensorCores get work
    # even when B == 1 (no effect on v5e/v6e: single TC).
    hw_split = 2 if (n_hw % 2 == 0 and n_hw >= 2) else 1
    n_per_split = n_hw // hw_split

    tile_bytes = (2 * thw * Cin * 2 + 2 * thw * D * out_bytes + thw * D * 4
                  + Cin * D * 2 + 4 * D * 4)
    vmem_limit = int(min(max(tile_bytes + (8 << 20), 16 << 20), 48 << 20))

    # ---- pass 1: per-(split, batch, channel) sum / sum-sq over HW tiles -----
    stats = pl.pallas_call(
        functools.partial(_gn_stats_kernel, hw=HW, thw=thw,
                          n_per_split=n_per_split, need_mask=need_mask),
        out_shape=jax.ShapeDtypeStruct((hw_split, B, 2, D), jnp.float32),
        grid=(hw_split, B, n_per_split),
        in_specs=[
            pl.BlockSpec((1, thw, Cin),
                         lambda si, bi, t: (bi, si * n_per_split + t, 0)),
            pl.BlockSpec((Cin, D), lambda si, bi, t: (0, 0)),
            pl.BlockSpec((1, D), lambda si, bi, t: (0, 0)),
        ],
        out_specs=pl.BlockSpec((1, 1, 2, D), lambda si, bi, t: (si, bi, 0, 0)),
        compiler_params=pltpu.CompilerParams(
            dimension_semantics=("parallel", "parallel", "arbitrary"),
            vmem_limit_bytes=vmem_limit),
    )(x, wq, b2)

    # ---- tiny XLA handoff: group stats -> per-(batch, channel) scale/shift --
    st = stats.sum(axis=0)                                      # (B, 2, D)
    n = float(HW * gsz)
    sum_g = st[:, 0].reshape(B, num_groups, gsz).sum(-1)        # (B, G)
    ssq_g = st[:, 1].reshape(B, num_groups, gsz).sum(-1)
    mean_g = sum_g / n
    # TODO(synk): E[x^2]-E[x]^2 in f32 can cancel for large means; acceptable
    #             for BEV features, clamped at 0 as a safety net.
    var_g = jnp.maximum(ssq_g / n - mean_g * mean_g, 0.0)
    inv_std_g = lax.rsqrt(var_g + eps)
    mean_c = jnp.repeat(mean_g, gsz, axis=1)                    # (B, D)
    inv_c = jnp.repeat(inv_std_g, gsz, axis=1)
    scale_c = gamma.reshape(1, D) * inv_c                       # (B, D)
    shift_c = beta.reshape(1, D) + (b.reshape(1, D) - mean_c) * scale_c
    scale_c = scale_c.astype(jnp.float32).reshape(B, 1, D)
    shift_c = shift_c.astype(jnp.float32).reshape(B, 1, D)

    # ---- pass 2: recompute the cheap channel matmul and apply scale/shift ---
    out = pl.pallas_call(
        _gn_apply_kernel,
        out_shape=jax.ShapeDtypeStruct((B, HW_pad, D), out_dtype),
        grid=(B, n_hw),
        in_specs=[
            pl.BlockSpec((1, thw, Cin), lambda bi, t: (bi, t, 0)),
            pl.BlockSpec((Cin, D), lambda bi, t: (0, 0)),
            pl.BlockSpec((1, 1, D), lambda bi, t: (bi, 0, 0)),
            pl.BlockSpec((1, 1, D), lambda bi, t: (bi, 0, 0)),
        ],
        out_specs=pl.BlockSpec((1, thw, D), lambda bi, t: (bi, t, 0)),
        compiler_params=pltpu.CompilerParams(
            dimension_semantics=("parallel", "parallel"),
            vmem_limit_bytes=vmem_limit),
    )(x, wq, scale_c, shift_c)
    return out[:, :HW].reshape(B, H, W, D)


# -----------------------------------------------------------------------------
# Kernel 2: contrastive head — G (layer, batch) pairs per grid step, bf16 MXU
#   gt_projs   = projector(projs[:, num_queries:])
#   pred_projs = predictor(projector(projs[:, :num_queries]))
#   sim        = CosineSimilarity(dim=2)(gt[:, None], pred[None, :]) / tau
# -----------------------------------------------------------------------------
def _contrastive_kernel(gt_ref, pred_ref,
                        pw1_ref, pb1_ref, pw2_ref, pb2_ref,
                        qw1_ref, qb1_ref, qw2_ref, qb2_ref,
                        sim_ref, *, inv_tau, eps):
    G, Ngp, F = gt_ref.shape
    _, Nqp, _ = pred_ref.shape
    C = pw2_ref.shape[1]
    eps2 = eps * eps

    def projector(x2d):                      # bf16 matmuls, f32 accumulation
        h = (jnp.dot(x2d, pw1_ref[...], preferred_element_type=jnp.float32)
             + pb1_ref[...])
        h = jnp.maximum(h, 0.0).astype(jnp.bfloat16)
        return (jnp.dot(h, pw2_ref[...], preferred_element_type=jnp.float32)
                + pb2_ref[...])

    def predictor(x2d):
        h = (jnp.dot(x2d, qw1_ref[...], preferred_element_type=jnp.float32)
             + qb1_ref[...])
        h = jnp.maximum(h, 0.0).astype(jnp.bfloat16)
        return (jnp.dot(h, qw2_ref[...], preferred_element_type=jnp.float32)
                + qb2_ref[...])

    # gt branch: projector only (detached in torch; forward math identical).
    gp = projector(gt_ref[...].reshape(G * Ngp, F))            # (G*Ngp, C) f32
    inv_g = lax.rsqrt(jnp.maximum(jnp.sum(gp * gp, axis=1, keepdims=True), eps2))
    gp = (gp * (inv_g * inv_tau)).astype(jnp.bfloat16).reshape(G, Ngp, C)

    # pred branch: predictor(projector(.)), large M = G*Nqp fills the MXU.
    pp = predictor(projector(pred_ref[...].reshape(G * Nqp, F))
                   .astype(jnp.bfloat16))                      # (G*Nqp, C) f32
    inv_p = lax.rsqrt(jnp.maximum(jnp.sum(pp * pp, axis=1, keepdims=True), eps2))
    pp = (pp * inv_p).astype(jnp.bfloat16).reshape(G, Nqp, C)

    # cosine / tau: both normalizations (and 1/tau) already folded in, so the
    # batched contraction over the last dims needs no transposes or rescaling.
    sim_ref[...] = jnp.einsum("gnc,gqc->gnq", gp, pp,
                              preferred_element_type=jnp.float32)


def contrastive_similarity(dec_class, dec_coord, proj_params, pred_params, *,
                           num_queries, tau, eps=1e-8,
                           vmem_budget_bytes=16 << 20):
    """dec_class: (L,B,Ntot,Ncls), dec_coord: (L,B,Ntot,7) -> sims (L,B,Ng,Nq)."""
    L, B, Ntot, _ = dec_class.shape
    Nq = num_queries
    Ng = Ntot - Nq
    LB = L * B
    projs = jnp.concatenate([dec_class, dec_coord], axis=-1)   # (L, B, Ntot, F)
    F = projs.shape[-1]
    C = proj_params["w2"].shape[1]

    Ngp = _round_up(Ng, _SUBLANE)
    Nqp = _round_up(max(Nq, _LANE), _LANE)       # lane-dense output last dim

    gt = projs[:, :, Nq:, :].reshape(LB, Ng, F)
    gt = jnp.pad(gt, ((0, 0), (0, Ngp - Ng), (0, 0))).astype(jnp.bfloat16)
    pred = projs[:, :, :Nq, :].reshape(LB, Nq, F)
    pred = jnp.pad(pred, ((0, 0), (0, Nqp - Nq), (0, 0))).astype(jnp.bfloat16)

    bf = lambda a: a.astype(jnp.bfloat16)
    pw1, pb1 = bf(proj_params["w1"]), proj_params["b1"].astype(jnp.float32)
    pw2, pb2 = bf(proj_params["w2"]), proj_params["b2"].astype(jnp.float32)
    qw1, qb1 = bf(pred_params["w1"]), pred_params["b1"].astype(jnp.float32)
    qw2, qb2 = bf(pred_params["w2"]), pred_params["b2"].astype(jnp.float32)

    # Fold G (layer, batch) pairs into one grid step (whole L*B when it fits):
    # amortizes per-step pipeline overhead and enlarges the MXU M dimension.
    weight_bytes = ((pw1.size + pw2.size + qw1.size + qw2.size) * 2
                    + (pb1.size + pb2.size + qb1.size + qb2.size) * 4)
    per_pair = (2 * (Ngp + Nqp) * F * 2          # dbl-buffered bf16 inputs
                + 2 * Ngp * Nqp * 4              # dbl-buffered f32 output
                + (Ngp + Nqp) * C * 8            # MLP intermediates
                + Ngp * Nqp * 4)                 # in-flight sim block
    G = 1
    for cand in range(1, LB + 1):
        if LB % cand == 0 and cand * per_pair + weight_bytes <= vmem_budget_bytes:
            G = cand
    vmem_limit = int(min(max(2 * G * per_pair + weight_bytes + (4 << 20),
                             16 << 20), 48 << 20))

    const = lambda shape: pl.BlockSpec(shape, lambda i: (0, 0))
    kernel = functools.partial(_contrastive_kernel, inv_tau=1.0 / tau, eps=eps)
    sim = pl.pallas_call(
        kernel,
        out_shape=jax.ShapeDtypeStruct((LB, Ngp, Nqp), jnp.float32),
        grid=(LB // G,),
        in_specs=[
            pl.BlockSpec((G, Ngp, F), lambda i: (i, 0, 0)),
            pl.BlockSpec((G, Nqp, F), lambda i: (i, 0, 0)),
            const((F, C)), const((1, C)), const((C, C)), const((1, C)),
            const((C, C)), const((1, C)), const((C, C)), const((1, C)),
        ],
        out_specs=pl.BlockSpec((G, Ngp, Nqp), lambda i: (i, 0, 0)),
        compiler_params=pltpu.CompilerParams(
            dimension_semantics=("parallel",),
            vmem_limit_bytes=vmem_limit),
    )(gt, pred, pw1, pb1, pw2, pb2, qw1, qb1, qw2, qb2)
    return sim.reshape(L, B, Ngp, Nqp)[:, :, :Ng, :Nq]


# -----------------------------------------------------------------------------
# Kernel 3: eval-path sigmoid over final class logits (sublane+lane dense block)
# -----------------------------------------------------------------------------
def _sigmoid_kernel(x_ref, o_ref):
    o_ref[...] = jax.nn.sigmoid(x_ref[...])


def sigmoid_logits(logits):
    # TODO(synk): in production just use jax.nn.sigmoid and let XLA fuse; this
    # Pallas version keeps a fully dense (rows, 128) single block.
    B, Nq, Ncls = logits.shape
    n = B * Nq * Ncls
    npad = _round_up(n, _SUBLANE * _LANE)
    flat = jnp.pad(logits.reshape(n), (0, npad - n)).reshape(npad // _LANE, _LANE)
    out = pl.pallas_call(
        _sigmoid_kernel,
        out_shape=jax.ShapeDtypeStruct((npad // _LANE, _LANE), jnp.float32),
    )(flat)
    return out.reshape(npad)[:n].reshape(B, Nq, Ncls)


# -----------------------------------------------------------------------------
# Pure-JAX references (for correctness spot checks)
# -----------------------------------------------------------------------------
def ref_input_proj(x, w, b, gamma, beta, num_groups=32, eps=1e-5):
    B, H, W, Cin = x.shape
    D = w.shape[1]
    xq = x.astype(jnp.bfloat16).astype(jnp.float32)   # same quantization as kernel
    wq = w.astype(jnp.bfloat16).astype(jnp.float32)
    y = jnp.einsum("bhwc,cd->bhwd", xq, wq) + b
    yg = y.reshape(B, H * W, num_groups, D // num_groups)
    mean = yg.mean(axis=(1, 3), keepdims=True)
    var = ((yg - mean) ** 2).mean(axis=(1, 3), keepdims=True)
    yn = (yg - mean) / jnp.sqrt(var + eps)
    return yn.reshape(B, H, W, D) * gamma + beta


def ref_contrastive(dec_class, dec_coord, pp_, qp_, num_queries, tau, eps=1e-8):
    projs = jnp.concatenate([dec_class, dec_coord], axis=-1)   # (L,B,Ntot,F)

    def mlp(x, p):
        return jnp.maximum(x @ p["w1"] + p["b1"], 0.0) @ p["w2"] + p["b2"]

    gt = mlp(projs[:, :, num_queries:, :], pp_)
    pr = mlp(mlp(projs[:, :, :num_queries, :], pp_), qp_)
    dots = jnp.einsum("lbgc,lbqc->lbgq", gt, pr)
    gn = jnp.maximum(jnp.linalg.norm(gt, axis=-1), eps)[..., :, None]
    pn = jnp.maximum(jnp.linalg.norm(pr, axis=-1), eps)[..., None, :]
    return dots / (gn * pn) / tau


# -----------------------------------------------------------------------------
# Deterministic parameter construction (matches module __init__ shapes)
# -----------------------------------------------------------------------------
def make_params(key, in_channels, hidden_dim, contras_dim):
    keys = iter(jax.random.split(key, 32))
    params = {"input_proj": []}
    for cin in in_channels:
        # Conv2d(cin, hidden_dim, k=1) xavier_uniform(gain=1), bias=0
        bound = (6.0 / (cin + hidden_dim)) ** 0.5
        w = jax.random.uniform(next(keys), (cin, hidden_dim), jnp.float32,
                               -bound, bound)
        params["input_proj"].append({
            "w": w,
            "b": jnp.zeros((hidden_dim,), jnp.float32),
            "gamma": jnp.ones((hidden_dim,), jnp.float32),   # GroupNorm defaults
            "beta": jnp.zeros((hidden_dim,), jnp.float32),
        })

    def linear(kk, fan_in, fan_out):
        bd = (1.0 / fan_in) ** 0.5
        k1, k2 = jax.random.split(kk)
        return (jax.random.uniform(k1, (fan_in, fan_out), jnp.float32, -bd, bd),
                jax.random.uniform(k2, (1, fan_out), jnp.float32, -bd, bd))

    # projector: Linear(10, C) -> ReLU -> Linear(C, C)
    w1, b1 = linear(next(keys), 10, contras_dim)
    w2, b2 = linear(next(keys), contras_dim, contras_dim)
    params["projector"] = {"w1": w1, "b1": b1, "w2": w2, "b2": b2}
    # predictor: Linear(C, C) -> ReLU -> Linear(C, C)
    w1, b1 = linear(next(keys), contras_dim, contras_dim)
    w2, b2 = linear(next(keys), contras_dim, contras_dim)
    params["predictor"] = {"w1": w1, "b1": b1, "w2": w2, "b2": b2}
    return params


# -----------------------------------------------------------------------------
# Forward (the parts of VoxelDETR.forward that are expressible here)
# -----------------------------------------------------------------------------
def voxel_detr_forward(params, backbone_feats, dec_class, dec_coord, *,
                       num_queries, tau, max_tile_rows=8192):
    # TODO(synk): Backbone3d / Transformer / Det3DHead / VoxelBoxCoder3D /
    #             prepare_for_cdn are external modules with no source here;
    #             their outputs (backbone_feats, dec_class, dec_coord) are
    #             synthesized by the caller.
    features = [
        input_proj_groupnorm(f, p["w"], p["b"], p["gamma"], p["beta"],
                             max_tile_rows=max_tile_rows)
        for f, p in zip(backbone_feats, params["input_proj"])
    ]

    # contrastive branch (training path): all decoder layers in one pallas_call
    sims = contrastive_similarity(dec_class, dec_coord,
                                  params["projector"], params["predictor"],
                                  num_queries=num_queries, tau=tau)

    # eval branch: sigmoid of final-layer logits of the matching queries
    out_prob = sigmoid_logits(dec_class[-1][:, :num_queries])
    # TODO(synk): torch.nonzero / top-k gather post-processing is dynamically
    #             shaped and left out of the kernel.
    return features, sims, out_prob


# -----------------------------------------------------------------------------
if __name__ == "__main__":
    key = jax.random.PRNGKey(0)
    B = 2
    hidden_dim = 128           # GroupNorm(32, hidden_dim); lane-aligned
    contras_dim = 32
    num_classes = 3            # Waymo: vehicle / pedestrian / cyclist
    num_queries = 16
    num_dn = 8                 # dn (noised-gt) queries appended after the real ones
    dec_layers = 2
    tau = 0.7
    in_channels = [32, 64]
    # (15, 17) -> HW = 255 has no multiple-of-8 divisor <= 64, so it exercises
    # the padded + masked tail tile AND the 2-way pass-1 split.
    spatial = [(15, 17), (8, 8)]

    k_par, k_f0, k_f1, k_cls, k_box = jax.random.split(key, 5)
    params = make_params(k_par, in_channels, hidden_dim, contras_dim)

    backbone_feats = [
        jax.random.normal(k_f0, (B, spatial[0][0], spatial[0][1], in_channels[0]),
                          jnp.float32),
        jax.random.normal(k_f1, (B, spatial[1][0], spatial[1][1], in_channels[1]),
                          jnp.float32),
    ]
    dec_class = jax.random.normal(
        k_cls, (dec_layers, B, num_queries + num_dn, num_classes), jnp.float32)
    dec_coord = jax.random.normal(
        k_box, (dec_layers, B, num_queries + num_dn, 7), jnp.float32)

    # max_tile_rows=64 forces multi-tile HW accumulation even at demo sizes.
    feats, sims, out_prob = voxel_detr_forward(
        params, backbone_feats, dec_class, dec_coord,
        num_queries=num_queries, tau=tau, max_tile_rows=64)
    jax.block_until_ready((feats, sims, out_prob))

    # correctness spot-checks against pure-JAX references
    ok = True
    for f, x, p in zip(feats, backbone_feats, params["input_proj"]):
        ref = ref_input_proj(x, p["w"], p["b"], p["gamma"], p["beta"])
        ok &= bool(jnp.allclose(f.astype(jnp.float32), ref, atol=3e-2, rtol=3e-2))
    ref_sims = ref_contrastive(dec_class, dec_coord,
                               params["projector"], params["predictor"],
                               num_queries, tau)
    ok &= bool(jnp.allclose(sims, ref_sims, atol=5e-2, rtol=5e-2))
    ok &= bool(jnp.allclose(out_prob,
                            jax.nn.sigmoid(dec_class[-1][:, :num_queries]),
                            atol=1e-5))
    ok &= bool(jnp.all(jnp.isfinite(sims))) and bool(jnp.all(jnp.isfinite(out_prob)))

    if ok:
        print("KERNEL_OK")
    else:
        print("MISMATCH")
</pallas_src>

<mosaic_0001>
module attributes {stable_mosaic.version = 11 : i64} {
  func.func @_gn_stats_kernel(%arg0: i32, %arg1: i32, %arg2: i32, %arg3: memref<1x64x32xbf16, #tpu.memory_space<vmem>>, %arg4: memref<32x128xbf16, #tpu.memory_space<vmem>>, %arg5: memref<1x128xf32, #tpu.memory_space<vmem>>, %arg6: memref<1x1x2x128xf32, #tpu.memory_space<vmem>>) attributes {dimension_semantics = [#tpu.dimension_semantics<parallel>, #tpu.dimension_semantics<parallel>, #tpu.dimension_semantics<arbitrary>], iteration_bounds = array<i64: 2, 2, 2>, scalar_prefetch = 0 : i64, scratch_operands = 0 : i64, tpu.core_type = #tpu.core_type<tc>, window_params = [{transform_indices = @transform_0, window_bounds = array<i64: 1, 64, 32>}, {pipeline_mode = #tpu.pipeline_mode<synchronous>, transform_indices = @transform_1, window_bounds = array<i64: 32, 128>}, {pipeline_mode = #tpu.pipeline_mode<synchronous>, transform_indices = @transform_2, window_bounds = array<i64: 1, 128>}, {transform_indices = @transform_3, window_bounds = array<i64: 1, 1, 2, 128>}]} {
    %c0 = arith.constant 0 : index
    %c0_0 = arith.constant 0 : index
    %c0_1 = arith.constant 0 : index
    %0 = vector.load %arg3[%c0, %c0_0, %c0_1] : memref<1x64x32xbf16, #tpu.memory_space<vmem>>, vector<1x64x32xbf16>
    %1 = vector.shape_cast %0 : vector<1x64x32xbf16> to vector<64x32xbf16>
    %c0_2 = arith.constant 0 : index
    %c0_3 = arith.constant 0 : index
    %2 = vector.load %arg4[%c0_2, %c0_3] : memref<32x128xbf16, #tpu.memory_space<vmem>>, vector<32x128xbf16>
    %cst = arith.constant dense<0.000000e+00> : vector<64x128xf32>
    %3 = tpu.matmul %1, %2, %cst {dimension_numbers = #tpu.dot_dimension_numbers<[1], [0], [0], [1], [0, 0, 1, 1], [], []>} : vector<64x32xbf16>, vector<32x128xbf16>, vector<64x128xf32> -> vector<64x128xf32>
    %c0_4 = arith.constant 0 : index
    %c0_5 = arith.constant 0 : index
    %4 = vector.load %arg5[%c0_4, %c0_5] : memref<1x128xf32, #tpu.memory_space<vmem>>, vector<1x128xf32>
    %5 = vector.broadcast %4 : vector<1x128xf32> to vector<64x128xf32>
    %6 = arith.addf %3, %5 : vector<64x128xf32>
    %c2_i32 = arith.constant 2 : i32
    %7 = arith.muli %arg0, %c2_i32 : i32
    %8 = arith.addi %7, %arg2 : i32
    %c64_i32 = arith.constant 64 : i32
    %9 = arith.muli %8, %c64_i32 : i32
    %10 = tpu.iota {dimensions = array<i32: 0>} : vector<64x128xi32>
    %11 = vector.broadcast %9 : i32 to vector<64x128xi32>
    %12 = arith.addi %11, %10 : vector<64x128xi32>
    %c255_i32 = arith.constant 255 : i32
    %13 = vector.broadcast %c255_i32 : i32 to vector<64x128xi32>
    %14 = arith.cmpi slt, %12, %13 : vector<64x128xi32>
    %cst_6 = arith.constant 0.000000e+00 : f32
    %15 = vector.broadcast %cst_6 : f32 to vector<64x128xf32>
    %16 = arith.select %14, %6, %15 : vector<64x128xi1>, vector<64x128xf32>
    %cst_7 = arith.constant dense<0.000000e+00> : vector<128xf32>
    %17 = vector.multi_reduction <add>, %16, %cst_7 [0] : vector<64x128xf32> to vector<128xf32>
    %18 = vector.shape_cast %17 : vector<128xf32> to vector<1x128xf32>
    %19 = arith.mulf %16, %16 : vector<64x128xf32>
    %cst_8 = arith.constant dense<0.000000e+00> : vector<128xf32>
    %20 = vector.multi_reduction <add>, %19, %cst_8 [0] : vector<64x128xf32> to vector<128xf32>
    %21 = vector.shape_cast %20 : vector<128xf32> to vector<1x128xf32>
    %22 = tpu.concatenate %18, %21 in 0 : vector<1x128xf32>, vector<1x128xf32> -> vector<2x128xf32>
    %c0_i32 = arith.constant 0 : i32
    %23 = arith.cmpi eq, %arg2, %c0_i32 : i32
    %24 = arith.extui %23 : i1 to i32
    %c0_i32_9 = arith.constant 0 : i32
    %25 = arith.cmpi ne, %24, %c0_i32_9 : i32
    scf.if %25 {
      %cst_18 = arith.constant 0.000000e+00 : f32
      %30 = vector.broadcast %cst_18 : f32 to vector<1x1x2x128xf32>
      %c0_19 = arith.constant 0 : index
      %c0_20 = arith.constant 0 : index
      %c0_21 = arith.constant 0 : index
      %c0_22 = arith.constant 0 : index
      %31 = vector.load %arg6[%c0_19, %c0_20, %c0_21, %c0_22] : memref<1x1x2x128xf32, #tpu.memory_space<vmem>>, vector<1x1x2x128xf32>
      tpu.vector_store %arg6[%c0_19, %c0_20, %c0_21, %c0_22], %30 {strides = array<i32>} : memref<1x1x2x128xf32, #tpu.memory_space<vmem>>, vector<1x1x2x128xf32>,
    } else {
    }
    %c0_10 = arith.constant 0 : index
    %c0_11 = arith.constant 0 : index
    %c0_12 = arith.constant 0 : index
    %c0_13 = arith.constant 0 : index
    %26 = vector.load %arg6[%c0_10, %c0_11, %c0_12, %c0_13] : memref<1x1x2x128xf32, #tpu.memory_space<vmem>>, vector<1x1x2x128xf32>
    %27 = vector.shape_cast %22 : vector<2x128xf32> to vector<1x1x2x128xf32>
    %28 = arith.addf %26, %27 : vector<1x1x2x128xf32>
    %c0_14 = arith.constant 0 : index
    %c0_15 = arith.constant 0 : index
    %c0_16 = arith.constant 0 : index
    %c0_17 = arith.constant 0 : index
    %29 = vector.load %arg6[%c0_14, %c0_15, %c0_16, %c0_17] : memref<1x1x2x128xf32, #tpu.memory_space<vmem>>, vector<1x1x2x128xf32>
    tpu.vector_store %arg6[%c0_14, %c0_15, %c0_16, %c0_17], %28 {strides = array<i32>} : memref<1x1x2x128xf32, #tpu.memory_space<vmem>>, vector<1x1x2x128xf32>,
    return
  }
  func.func @transform_0(%arg0: i32, %arg1: i32, %arg2: i32) -> (i32, i32, i32) {
    %c2_i32 = arith.constant 2 : i32
    %0 = arith.muli %arg0, %c2_i32 : i32
    %1 = arith.addi %0, %arg2 : i32
    %c0_i32 = arith.constant 0 : i32
    %c0_i32_0 = arith.constant 0 : i32
    return %arg1, %1, %c0_i32 : i32, i32, i32
  }
  func.func @transform_1(%arg0: i32, %arg1: i32, %arg2: i32) -> (i32, i32) {
    %c0_i32 = arith.constant 0 : i32
    %c0_i32_0 = arith.constant 0 : i32
    %c0_i32_1 = arith.constant 0 : i32
    return %c0_i32, %c0_i32_0 : i32, i32
  }
  func.func @transform_2(%arg0: i32, %arg1: i32, %arg2: i32) -> (i32, i32) {
    %c0_i32 = arith.constant 0 : i32
    %c0_i32_0 = arith.constant 0 : i32
    %c0_i32_1 = arith.constant 0 : i32
    return %c0_i32, %c0_i32_0 : i32, i32
  }
  func.func @transform_3(%arg0: i32, %arg1: i32, %arg2: i32) -> (i32, i32, i32, i32) {
    %c0_i32 = arith.constant 0 : i32
    %c0_i32_0 = arith.constant 0 : i32
    %c0_i32_1 = arith.constant 0 : i32
    return %arg0, %arg1, %c0_i32, %c0_i32_0 : i32, i32, i32, i32
  }
}

</mosaic_0001>

<llo_original>
// kernel: tpu_custom_call.1
$region0: #{tpu_custom_call.1}
  #allocation0 [shape = 'u32[]', space=smem, size = 0x4, offset = 0x4, fixed_abs, tag = 'smem constant byte address 0x4 - core index']
  #allocation1 [shape = 'u32[144,128]{1,0:T(1,128)}', space=vmem, size = 0x12000, scoped, tag = 'internal scratch']
  %s0 = inlined_call_operand.vmem [shape: bf16[2,256,32], index: 0, kind: input, shape index: {}]
  %s1 = inlined_call_operand.vmem [shape: bf16[32,128], index: 1, kind: input, shape index: {}]
  %s2 = inlined_call_operand.vmem [shape: f32[1,128], index: 2, kind: input, shape index: {}]
  %s3 = inlined_call_operand.hbm [shape: f32[2,2,2,128], index: 3, kind: output, shape index: {}]
  %s4 = sld [smem:[#allocation0]]
  $region49: #{tpu_custom_call.1} parent=0
    _
  %s6 = ssub.s32 1, %s4
  %s7 = scalar_select 0, %s6, %s4
  $region1: #{tpu_custom_call.1} parent=0
    #allocation2 [shape = 'u8[2048]{0}', space=vmem, size = 0x800, scoped, tag = 'output window, operand 0']
    #allocation3 [shape = 's32[2]{0}', space=sflag, size = 0x8, scoped, tag = 'scoped memory for tpu_custom_call.1']
    %8 = vsyncpa [#allocation3], 0
    %s9 = scalar_lea.sflag [#allocation3], 1
    %10 = vsyncpa %s9, 0
    loop: start=0, step=1, limit=10
    $region2: #{tpu_custom_call.1} parent=1 // loop_pre_header
      _
    $region3: #{tpu_custom_call.1} parent=1 // loop_header
      %s12 = sphi 0, %s16
      %p13 = scmp.ge.s32.totalorder %s12, 10
      %s19 = sphi 0, %s38
      %s20 = sphi 0, %s34
      %s21 = sphi 0, %s30
      %s22 = sphi 0, %s19
      %s23 = sphi 0, %s20
      %s24 = sphi 0, %s21
      %s25 = sphi 0, %s22
      %s26 = sphi 0, %s23
      %s27 = sphi 0, %s24
      %s47 = sphi 0, %s49
      %s50 = sphi 0, %s47
      %s51 = sphi 0, %s50
      %s67 = sphi 0, %s51
      %s71 = sphi 0, %s71
      %s73 = sphi 0, %s71
      %s74 = sphi 0, %s73
      %s88 = sphi 0, %s74
      %s92 = sphi 0, %s92
      %s94 = sphi 0, %s92
      %s95 = sphi 0, %s94
      %s109 = sphi 0, %s95
      %s117 = sphi 0, %s119
      %s120 = sphi 0, %s117
      %s121 = sphi 0, %s120
      %s137 = sphi 0, %s121
    $region4: #{tpu_custom_call.1} parent=1 // loop_header_branch
      %15 = sbr.rel (%p13) target = $region8
    $region5: #{tpu_custom_call.1} parent=1 // loop_body
      %s17 = ssub.s32 %s12, 1
      %s18 = ssub.s32 %s12, 2
      %s28 = sadd.s32 1, %s21
      %p29 = scmp.ge.s32.totalorder %s28, 2
      %s30 = scalar_select %p29, 0, %s28
      %s31 = sadd.s32 1, %s20
      %s32 = scalar_select %p29, %s31, %s20
      %p33 = scmp.ge.s32.totalorder %s32, 2
      %s34 = scalar_select %p33, 0, %s32
      %s35 = sadd.s32 1, %s19
      %s36 = scalar_select %p33, %s35, %s19
      %p37 = scmp.ge.s32.totalorder %s36, 2
      %s38 = scalar_select %p37, 0, %s36
      %s39 = smul.u32 %s19, 2
      %s40 = sadd.s32 %s39, %s21
      %s41 = smul.u32 %s38, 2
      %s42 = sadd.s32 %s41, %s30
      %s43 = ssub.s32 %s20, %s34
      %s44 = ssub.s32 %s40, %s42
      %s45 = sor.u32 %s43, %s44
      %p46 = scmp.eq.s32.totalorder %s45, 0
      %s48 = sadd.s32 %s47, 1
      %s49 = scalar_select %p46, %s47, %s48
      %p52 = pneg %p46
      %p53 = scmp.eq.s32.totalorder %s12, 7
      %p54 = por %p52, %p53
      %p55 = scmp.ne.s32.totalorder %s47, %s50
      %p56 = scmp.eq.s32.totalorder %s12, 0
      %p57 = por %p55, %p56
      %p58 = scmp.ne.s32.totalorder %s47, %s50
      %p59 = scmp.eq.s32.totalorder %s17, 7
      %p60 = por %p58, %p59
      %p61 = scmp.ne.s32.totalorder %s50, %s51
      %p62 = scmp.eq.s32.totalorder %s17, 0
      %p63 = por %p61, %p62
      %p64 = scmp.ne.s32.totalorder %s50, %s51
      %p65 = scmp.eq.s32.totalorder %s18, 7
      %p66 = por %p64, %p65
      %p68 = scmp.ne.s32.totalorder %s51, %s67
      %p69 = scmp.eq.s32.totalorder %s18, 0
      %p70 = por %p68, %p69
      %s72 = sadd.s32 %s71, 1
      %p75 = scmp.eq.s32.totalorder %s12, 7
      %p76 = scmp.ne.s32.totalorder %s71, %s73
      %p77 = scmp.eq.s32.totalorder %s12, 0
      %p78 = por %p76, %p77
      %p79 = scmp.ne.s32.totalorder %s71, %s73
      %p80 = scmp.eq.s32.totalorder %s17, 7
      %p81 = por %p79, %p80
      %p82 = scmp.ne.s32.totalorder %s73, %s74
      %p83 = scmp.eq.s32.totalorder %s17, 0
      %p84 = por %p82, %p83
      %p85 = scmp.ne.s32.totalorder %s73, %s74
      %p86 = scmp.eq.s32.totalorder %s18, 7
      %p87 = por %p85, %p86
      %p89 = scmp.ne.s32.totalorder %s74, %s88
      %p90 = scmp.eq.s32.totalorder %s18, 0
      %p91 = por %p89, %p90
      %s93 = sadd.s32 %s92, 1
      %p96 = scmp.eq.s32.totalorder %s12, 7
      %p97 = scmp.ne.s32.totalorder %s92, %s94
      %p98 = scmp.eq.s32.totalorder %s12, 0
      %p99 = por %p97, %p98
      %p100 = scmp.ne.s32.totalorder %s92, %s94
      %p101 = scmp.eq.s32.totalorder %s17, 7
      %p102 = por %p100, %p101
      %p103 = scmp.ne.s32.totalorder %s94, %s95
      %p104 = scmp.eq.s32.totalorder %s17, 0
      %p105 = por %p103, %p104
      %p106 = scmp.ne.s32.totalorder %s94, %s95
      %p107 = scmp.eq.s32.totalorder %s18, 7
      %p108 = por %p106, %p107
      %p110 = scmp.ne.s32.totalorder %s95, %s109
      %p111 = scmp.eq.s32.totalorder %s18, 0
      %p112 = por %p110, %p111
      %s113 = ssub.s32 %s19, %s38
      %s114 = ssub.s32 %s20, %s34
      %s115 = sor.u32 %s113, %s114
      %p116 = scmp.eq.s32.totalorder %s115, 0
      %s118 = sadd.s32 %s117, 1
      %s119 = scalar_select %p116, %s117, %s118
      %p122 = pneg %p116
      %p123 = scmp.eq.s32.totalorder %s12, 7
      %p124 = por %p122, %p123
      %p125 = scmp.ne.s32.totalorder %s117, %s120
      %p126 = scmp.eq.s32.totalorder %s12, 0
      %p127 = por %p125, %p126
      %p128 = scmp.ne.s32.totalorder %s117, %s120
      %p129 = scmp.eq.s32.totalorder %s17, 7
      %p130 = por %p128, %p129
      %p131 = scmp.ne.s32.totalorder %s120, %s121
      %p132 = scmp.eq.s32.totalorder %s17, 0
      %p133 = por %p131, %p132
      %p134 = scmp.ne.s32.totalorder %s120, %s121
      %p135 = scmp.eq.s32.totalorder %s18, 7
      %p136 = por %p134, %p135
      %p138 = scmp.ne.s32.totalorder %s121, %s137
      %p139 = scmp.eq.s32.totalorder %s18, 0
      %p140 = por %p138, %p139
      %p141 = scmp.le.s32.totalorder 1, %s12
      %p142 = scmp.lt.s32.totalorder %s12, 9
      %p143 = pnand %p141, %p142
      %p144 = pneg %p143
      // Predicated region
      $region9: #{tpu_custom_call.1} parent=5 // pred_check
        _
      $region10: #{tpu_custom_call.1} parent=5 // pred_check_branch
        %146 = sbr.rel (%p143) target = $region12
      $region11: #{tpu_custom_call.1} parent=5 // pred_region
        %s147 = ssub.s32 %s12, 1
        // Predicated region
        $region13: #{tpu_custom_call.1} parent=11 // pred_check
          %p148 = pneg %p84
        $region14: #{tpu_custom_call.1} parent=11 // pred_check_branch
          %150 = sbr.rel (%p148) target = $region16
        $region15: #{tpu_custom_call.1} parent=11 // pred_region
          _
        $region16: #{tpu_custom_call.1} parent=11 // pred_fallthru
          _
        // Predicated region
        $region17: #{tpu_custom_call.1} parent=11 // pred_check
          %p151 = pneg %p105
        $region18: #{tpu_custom_call.1} parent=11 // pred_check_branch
          %153 = sbr.rel (%p151) target = $region20
        $region19: #{tpu_custom_call.1} parent=11 // pred_region
          _
        $region20: #{tpu_custom_call.1} parent=11 // pred_fallthru
          _
      $region12: #{tpu_custom_call.1} parent=5 // pred_fallthru
        _
      %p154 = scmp.lt.s32.totalorder %s12, 8
      // Predicated region
      $region21: #{tpu_custom_call.1} parent=5 // pred_check
        %p155 = pneg %p154
      $region22: #{tpu_custom_call.1} parent=5 // pred_check_branch
        %157 = sbr.rel (%p155) target = $region24
      $region23: #{tpu_custom_call.1} parent=5 // pred_region
        // Predicated region
        $region25: #{tpu_custom_call.1} parent=23 // pred_check
          %p158 = pneg %p57
        $region26: #{tpu_custom_call.1} parent=23 // pred_check_branch
          %160 = sbr.rel (%p158) target = $region28
        $region27: #{tpu_custom_call.1} parent=23 // pred_region
          %s161 = smul.u32 %s19, 2
          %s162 = sadd.s32 %s161, %s21
          %s163 = smul.u32 8, %s162
          %p164 = scmp.lt.s32.totalorder %s20, 1
          %s165 = scalar_select %p164, %s20, 1
          %p166 = scmp.lt.s32.totalorder %s163, 31
          %s167 = scalar_select %p166, %s163, 31
          %s168 = smul.addr %s165, 32
          %s169 = sadd.s32 %s167, %s168
          %s170 = smul.addr %s169, 4
          %s171 = scalar_lea.vmem %s0, %s170
          %s172 = smul.u32 %s19, 2
          %s173 = sadd.s32 %s172, %s21
          %s174 = smul.u32 8, %s173
        $region28: #{tpu_custom_call.1} parent=23 // pred_fallthru
          _
      $region24: #{tpu_custom_call.1} parent=5 // pred_fallthru
        _
      %p175 = scmp.le.s32.totalorder 1, %s12
      %p176 = scmp.lt.s32.totalorder %s12, 9
      %p177 = pnand %p175, %p176
      %p178 = pneg %p177
      // Predicated region
      $region29: #{tpu_custom_call.1} parent=5 // pred_check
        _
      $region30: #{tpu_custom_call.1} parent=5 // pred_check_branch
        %180 = sbr.rel (%p177) target = $region32
      $region31: #{tpu_custom_call.1} parent=5 // pred_region
        %s181 = ssub.s32 %s12, 1
        %s182 = smul.u32 %s22, 2
        %s183 = sadd.s32 %s182, %s24
        %s184 = smul.u32 8, %s183
        %p185 = scmp.lt.s32.totalorder %s23, 1
        %s186 = scalar_select %p185, %s23, 1
        %p187 = scmp.lt.s32.totalorder %s184, 31
        %s188 = scalar_select %p187, %s184, 31
        %s189 = smul.addr %s186, 32
        %s190 = sadd.s32 %s188, %s189
        %s191 = smul.addr %s190, 4
        %s192 = scalar_lea.vmem %s0, %s191
        %p193 = pneg %p63
        %p194 = pneg %p60
        %p195 = pneg %p84
        %p196 = pneg %p81
        %p197 = pneg %p105
        %p198 = pneg %p102
        %p199 = pneg %p133
        %p200 = pneg %p130
        %s201 = sand.u32 %s120, 1
        %s202 = scalar_lea.sflag [#allocation3], %s201
        %s203 = sand.u32 %s120, 1
        %s204 = smul.addr %s203, 2
        %s205 = scalar_lea.vmem [#allocation2], %s204
        %s206 = smul.u32 %s22, 2
        %s207 = sadd.s32 %s206, %s24
        %s208 = smul.u32 8, %s207
        %p209 = scmp.lt.s32.totalorder %s23, 1
        %s210 = scalar_select %p209, %s23, 1
        %p211 = scmp.lt.s32.totalorder %s208, 31
        %s212 = scalar_select %p211, %s208, 31
        %s213 = smul.addr %s210, 32
        %s214 = sadd.s32 %s212, %s213
        %s215 = smul.addr %s214, 4
        %s216 = scalar_lea.vmem %s0, %s215
        %s217 = smul.u32 %s22, 2
        %s218 = sadd.s32 %s217, %s24
        %s219 = smul.u32 8, %s218
        %v221 = vld [vmem:[%s216] sm:$0xf]
        %v222 = vld [vmem:[%s216 + $0x4] sm:$0xf]
        %v223 = vld [vmem:[%s216 + $0x8] sm:$0xf]
        %v224 = vld [vmem:[%s216 + $0xc] sm:$0xf]
        %v225 = vld [vmem:[%s216 + $0x10] sm:$0xf]
        %v226 = vld [vmem:[%s216 + $0x14] sm:$0xf]
        %v227 = vld [vmem:[%s216 + $0x18] sm:$0xf]
        %v228 = vld [vmem:[%s216 + $0x1c] sm:$0xf]
        %v229 = vld [vmem:[%s1] sm:$0xf]
        %v230 = vld [vmem:[%s1 + $0x4] sm:$0xf]
        %v231 = vld [vmem:[%s1 + $0x8] sm:$0xf]
        %v232 = vld [vmem:[%s1 + $0xc] sm:$0xf]
        %v233 = vld [vmem:[%s2] sm:$0x1]
        %v235 = vlaneseq
        %v236 = vshrl.u32 %v235, 7
        %v237 = vsub.s32 0, %v236
        %v238 = vrot.slane %v233, %v237
        %v248 = vunpack.c.l.b16 %v221
        %v249 = vunpack.c.l.b16 %v222
        %v250 = vunpack.c.l.b16 %v223
        %v251 = vunpack.c.l.b16 %v224
        %v252 = vunpack.c.l.b16 %v225
        %v253 = vunpack.c.l.b16 %v226
        %v254 = vunpack.c.l.b16 %v227
        %v255 = vunpack.c.l.b16 %v228
        %v256 = vpack.c.b16 %v249, %v248
        %v257 = vpack.c.b16 %v251, %v250
        %v258 = vpack.c.b16 %v253, %v252
        %v259 = vpack.c.b16 %v255, %v254
        %v264 = vunpack.c.l.b16 %v229
        %v265 = vunpack.c.l.b16 %v230
        %v266 = vunpack.c.l.b16 %v231
        %v267 = vunpack.c.l.b16 %v232
        %v268 = vpack.c.b16 %v265, %v264
        %v269 = vpack.c.b16 %v267, %v266
        %vm272 = vcmask 261120
        %v274 = vsel %vm272, %v256, 0
        %v277 = vsel %vm272, %v257, 0
        %v280 = vsel %vm272, %v258, 0
        %v283 = vsel %vm272, %v259, 0
        %285 = vmatprep.subr.bf16.mxu0 0
        %286 = vmatpush1.bf16.msra.mxu0 0
        %287 = vmatprep.subr.bf16.mxu0 0
        %288 = vmatpush1.bf16.msra.mxu0 0
        %289 = vmatprep.subr.bf16.mxu0 0
        %290 = vmatpush1.bf16.msra.mxu0 0
        %291 = vmatprep.subr.bf16.mxu0 0
        %292 = vmatpush1.bf16.msra.mxu0 0
        %293 = vmatprep.subr.bf16.mxu0 0
        %294 = vmatpush1.bf16.msra.mxu0 0
        %295 = vmatprep.subr.bf16.mxu0 0
        %296 = vmatpush1.bf16.msra.mxu0 0
        %297 = vmatprep.subr.bf16.mxu0 0
        %298 = vmatpush1.bf16.msra.mxu0 %v269
        %299 = vmatprep.subr.bf16.mxu0 0
        %300 = vmatpush1.bf16.msra.mxu0 %v268
        %301 = vmatprep.subr.bf16.mxu0 0
        %302 = vmatpush2.bf16.msra.mxu0 0
        %303 = vmatprep.subr.bf16.mxu0 0
        %304 = vmatpush2.bf16.msra.mxu0 0
        %305 = vmatprep.subr.bf16.mxu0 0
        %306 = vmatpush2.bf16.msra.mxu0 0
        %307 = vmatprep.subr.bf16.mxu0 0
        %308 = vmatpush2.bf16.msra.mxu0 0
        %309 = vmatprep.subr.bf16.mxu0 0
        %310 = vmatpush2.bf16.msra.mxu0 0
        %311 = vmatprep.subr.bf16.mxu0 0
        %312 = vmatpush2.bf16.msra.mxu0 0
        %313 = vmatprep.subr.bf16.mxu0 0
        %314 = vmatpush2.bf16.msra.mxu0 0
        %315 = vmatprep.subr.bf16.mxu0 0
        %316 = vmatpush2.bf16.msra.mxu0 0
        %317 = vmatprep.mubr.bf16.mxu0 0
        %318 = vmatmul.mubr.bf16.gmra.mxu0 %v274
        %v319 = vpop.f32.mrf.mxu0
        %v320 = vadd.f32 %v238, %v319
        %v321 = vpop.f32.mrf.mxu0
        %v322 = vpop.f32.mrf.mxu0
        %v323 = vadd.f32 %v238, %v322
        %v324 = vpop.f32.mrf.mxu0
        %325 = vmatprep.mubr.bf16.mxu0 0
        %326 = vmatmul.mubr.bf16.gmra.mxu0 %v277
        %v327 = vpop.f32.mrf.mxu0
        %v328 = vadd.f32 %v238, %v327
        %v329 = vpop.f32.mrf.mxu0
        %v330 = vpop.f32.mrf.mxu0
        %v331 = vadd.f32 %v238, %v330
        %v332 = vpop.f32.mrf.mxu0
        %333 = vmatprep.mubr.bf16.mxu0 0
        %334 = vmatmul.mubr.bf16.gmra.mxu0 %v280
        %v335 = vpop.f32.mrf.mxu0
        %v336 = vadd.f32 %v238, %v335
        %v337 = vpop.f32.mrf.mxu0
        %v338 = vpop.f32.mrf.mxu0
        %v339 = vadd.f32 %v238, %v338
        %v340 = vpop.f32.mrf.mxu0
        %341 = vmatprep.mubr.bf16.mxu0 0
        %342 = vmatmul.mubr.bf16.gmra.mxu0 %v283
        %v343 = vpop.f32.mrf.mxu0
        %v344 = vadd.f32 %v238, %v343
        %v345 = vpop.f32.mrf.mxu0
        %v346 = vpop.f32.mrf.mxu0
        %v347 = vadd.f32 %v238, %v346
        %v348 = vpop.f32.mrf.mxu0
        %349 = vdwg.mxu0
        %s350 = smul.u32 %s22, 2
        %s351 = sadd.s32 %s350, %s24
        %s352 = smul.u32 %s351, 64
        %v353 = vlaneseq
        %v354 = vshrl.u32 %v353, 7
        %v355 = vadd.s32 %v354, 8
        %v356 = vadd.s32 %v354, 16
        %v357 = vadd.s32 %v354, 24
        %v358 = vadd.s32 %v354, 32
        %v359 = vadd.s32 %v354, 40
        %v360 = vadd.s32 %v354, 48
        %v361 = vadd.s32 %v354, 56
        %v362 = vstv %s352
        %v363 = vadd.s32 %v362, %v354
        %v364 = vadd.s32 %v362, %v355
        %v365 = vadd.s32 %v362, %v356
        %v366 = vadd.s32 %v362, %v357
        %v367 = vadd.s32 %v362, %v358
        %v368 = vadd.s32 %v362, %v359
        %v369 = vadd.s32 %v362, %v360
        %v370 = vadd.s32 %v362, %v361
        %vm371 = vcmp.lt.s32.totalorder %v363, 255
        %vm372 = vcmp.lt.s32.totalorder %v364, 255
        %vm373 = vcmp.lt.s32.totalorder %v365, 255
        %vm374 = vcmp.lt.s32.totalorder %v366, 255
        %vm375 = vcmp.lt.s32.totalorder %v367, 255
        %vm376 = vcmp.lt.s32.totalorder %v368, 255
        %vm377 = vcmp.lt.s32.totalorder %v369, 255
        %vm378 = vcmp.lt.s32.totalorder %v370, 255
        %v379 = vsel %vm371, %v320, 0.0
        %v380 = vsel %vm372, %v323, 0.0
        %v381 = vsel %vm373, %v328, 0.0
        %v382 = vsel %vm374, %v331, 0.0
        %v383 = vsel %vm375, %v336, 0.0
        %v384 = vsel %vm376, %v339, 0.0
        %v385 = vsel %vm377, %v344, 0.0
        %v386 = vsel %vm378, %v347, 0.0
        %v387 = vadd.f32 %v379, %v380
        %v388 = vadd.f32 %v387, %v381
        %v389 = vadd.f32 %v388, %v382
        %v390 = vadd.f32 %v389, %v383
        %v391 = vadd.f32 %v390, %v384
        %v392 = vadd.f32 %v391, %v385
        %v393 = vadd.f32 %v392, %v386
        %v394 = vrot.slane %v393, 4
        %v395 = vadd.f32 %v393, %v394
        %v396 = vrot.slane %v395, 2
        %v397 = vadd.f32 %v395, %v396
        %v398 = vrot.slane %v397, 1
        %v399 = vadd.f32 %v397, %v398
        %v400 = vmul.f32 %v379, %v379
        %v401 = vmul.f32 %v380, %v380
        %v402 = vmul.f32 %v381, %v381
        %v403 = vmul.f32 %v382, %v382
        %v404 = vmul.f32 %v383, %v383
        %v405 = vmul.f32 %v384, %v384
        %v406 = vmul.f32 %v385, %v385
        %v407 = vmul.f32 %v386, %v386
        %v408 = vadd.f32 %v400, %v401
        %v409 = vadd.f32 %v408, %v402
        %v410 = vadd.f32 %v409, %v403
        %v411 = vadd.f32 %v410, %v404
        %v412 = vadd.f32 %v411, %v405
        %v413 = vadd.f32 %v412, %v406
        %v414 = vadd.f32 %v413, %v407
        %v415 = vrot.slane %v414, 4
        %v416 = vadd.f32 %v414, %v415
        %v417 = vrot.slane %v416, 2
        %v418 = vadd.f32 %v416, %v417
        %v419 = vrot.slane %v418, 1
        %v420 = vadd.f32 %v418, %v419
        %vm421 = vcmask 1040384
        %v422 = vsel %vm421, %v399, %v420
        %p423 = scmp.eq.s32.totalorder %s24, 0
        // Predicated region
        $region33: #{tpu_custom_call.1} parent=31 // pred_check
          %p424 = pneg %p423
        $region34: #{tpu_custom_call.1} parent=31 // pred_check_branch
          %426 = sbr.rel (%p424) target = $region36
        $region35: #{tpu_custom_call.1} parent=31 // pred_region
          %427 = vst [vmem:[%s205] sm:$0x3] 0.0
        $region36: #{tpu_custom_call.1} parent=31 // pred_fallthru
          _
        %v428 = vld [vmem:[%s205] sm:$0x3]
        %v429 = vadd.f32 %v428, %v422
        %430 = vst [vmem:[%s205] sm:$0x3] %v429
        %s431 = sand.u32 %s120, 1
        %s432 = scalar_lea.sflag [#allocation3], %s431
        %s433 = sand.u32 %s120, 1
        %s434 = smul.addr %s433, 2
        %s435 = scalar_lea.vmem [#allocation2], %s434
        // Predicated region
        $region37: #{tpu_custom_call.1} parent=31 // pred_check
          %p436 = pneg %p130
        $region38: #{tpu_custom_call.1} parent=31 // pred_check_branch
          %438 = sbr.rel (%p436) target = $region40
        $region39: #{tpu_custom_call.1} parent=31 // pred_region
          %s440 = ssub.s32 32, 32
          %441 = vsyncadd %s432, %s440
          %s442 = smul.addr %s22, 2
          %s443 = sadd.s32 %s23, %s442
          %s444 = smul.addr %s443, 32
          %s445 = scalar_lea.hbm %s3, %s444
          %s447 = sshll.u32 %s435, 4
          %s448 = int_to_ptr.vmem [resolvable:$true] %s447
          %450 = dma.vmem_to_hbm [thread:$0]  %s448, 32, %s445, %s432
        $region40: #{tpu_custom_call.1} parent=31 // pred_fallthru
          _
      $region32: #{tpu_custom_call.1} parent=5 // pred_fallthru
        _
      %p451 = scmp.le.s32.totalorder 2, %s12
      // Predicated region
      $region41: #{tpu_custom_call.1} parent=5 // pred_check
        %p452 = pneg %p451
      $region42: #{tpu_custom_call.1} parent=5 // pred_check_branch
        %454 = sbr.rel (%p452) target = $region44
      $region43: #{tpu_custom_call.1} parent=5 // pred_region
        %s455 = ssub.s32 %s12, 2
        // Predicated region
        $region45: #{tpu_custom_call.1} parent=43 // pred_check
          %p456 = pneg %p136
        $region46: #{tpu_custom_call.1} parent=43 // pred_check_branch
          %458 = sbr.rel (%p456) target = $region48
        $region47: #{tpu_custom_call.1} parent=43 // pred_region
          %s459 = sand.u32 %s121, 1
          %s460 = scalar_lea.sflag [#allocation3], %s459
          %s461 = sand.u32 %s121, 1
          %s462 = smul.addr %s461, 2
          %s463 = scalar_lea.vmem [#allocation2], %s462
          %464 = dma.done %s460, 32
        $region48: #{tpu_custom_call.1} parent=43 // pred_fallthru
          _
      $region44: #{tpu_custom_call.1} parent=5 // pred_fallthru
        _
    $region6: #{tpu_custom_call.1} parent=1 // loop_footer
      %s16 = sadd.s32 1, %s12
    $region7: #{tpu_custom_call.1} parent=1 // loop_footer_branch
      %11 = sbr.rel target = $region3
    $region8: #{tpu_custom_call.1} parent=1 // loop_exit
      _
    %465 = vsyncpa [#allocation3], 1
    %s466 = scalar_lea.sflag [#allocation3], 1
    %467 = vsyncpa %s466, 1

</llo_original>
